<compile_context>
chip_gen: v6e
topology: v6e:2x2x1
jax: 0.10.0
libtpu: 0.0.40
codegen_flags: <defaults>
</compile_context>

<pallas_src>
import jax
import jax.numpy as jnp
from jax.experimental import pallas as pl
from jax.experimental.pallas import tpu as pltpu


def _bce_kernel(p_ref, t_ref, o_ref):
    p = p_ref[...]
    t = t_ref[...]
    # PyTorch F.binary_cross_entropy clamps each log term at -100 (reduction='none').
    # log1p(-p) matches ATen's formulation for the (1 - p) branch.
    # Clamp BEFORE the multiply so t * log(p) never produces 0 * (-inf) = NaN.
    log_p = jnp.maximum(jnp.log(p), -100.0)
    log_1mp = jnp.maximum(jnp.log1p(-p), -100.0)
    o_ref[...] = -(t * log_p + (1.0 - t) * log_1mp)


def _round_up(x, m):
    return -(-x // m) * m


def _device_tuning():
    """Returns (per-operand tile bytes, vmem_limit_bytes, try core-parallel split)."""
    try:
        kind = jax.devices()[0].device_kind.lower()
    except Exception:  # pragma: no cover - defensive, keep defaults
        kind = ""
    if "v6" in kind:
        # 128 MiB physical VMEM: ~8 MiB/operand tiles (~2% per-step overhead).
        return 8 << 20, 100 << 20, False
    if "v7" in kind:
        # 64 MiB physical VMEM (half of v5e/v6e): 4 MiB/operand keeps
        # 3 operands x 2 buffers ~24 MiB; shard the grid across the 2 TCs.
        return 4 << 20, 40 << 20, True
    # v5e / unknown: 4 MiB/operand; must raise the 16 MiB scoped-VMEM default.
    return 4 << 20, 48 << 20, False


def _choose_layout(n_elems):
    """Lane-dense 2D view (ROWS, LANE) of one batch element, ROWS*LANE == n."""
    lanes = [c for c in (1024, 512, 256, 128) if n_elems % c == 0]
    if not lanes:
        return None
    for lane in lanes:  # prefer full 8-sublane row counts (unmasked vst)
        if (n_elems // lane) % 8 == 0:
            return n_elems // lane, lane
    lane = lanes[0]
    return n_elems // lane, lane


def _choose_row_tile(rows, lane, tile_bytes, min_tiles=2):
    """Row tile that keeps blocks (8,128)-legal: a multiple of 8, or the full
    extent. Ragged last tile (grid = cdiv) is masked by Pallas."""
    if rows <= 8:
        return rows
    budget = max(8, ((tile_bytes // 4) // max(lane, 1)) // 8 * 8)
    tile = budget
    if min_tiles > 1 and rows > 16:
        # prefer >=2 grid steps: enables DMA/compute overlap and multi-TC split
        tile = min(tile, max(8, _round_up((rows + min_tiles - 1) // min_tiles, 8)))
    if tile >= rows:
        return rows  # single full-extent block (always layout-legal)
    return tile


@jax.jit
def pixelwise_bce_loss(inputs, targets):
    """inputs/targets: (B, C, H, W) float32 probabilities in [0, 1].

    Returns (C, H, W) elementwise BCE of the LAST batch element (PyTorch-loop semantics).
    """
    assert inputs.shape == targets.shape
    B, C, H, W = inputs.shape
    assert B >= 1, "PixelWiseBCELoss semantics require at least one batch element"
    N = C * H * W

    tile_bytes, vmem_limit, want_core_parallel = _device_tuning()
    per_operand_cap = vmem_limit // 8  # 3 operands x 2 buffers + headroom

    pad_cols = 0
    if N % 128 == 0:
        ROWS, LANE = _choose_layout(N)
    else:
        HW = H * W
        tile_c = _choose_row_tile(C, HW, tile_bytes)
        if tile_c * HW * 4 <= per_operand_cap:
            # Tile over C; full-extent last dim (H*W) keeps the block layout-legal.
            ROWS, LANE = C, HW
        else:
            # Last resort for huge, lane-awkward elements: pad the flattened
            # element to a multiple of 1024 so the lane-dense path applies.
            LANE = 1024
            n_pad = _round_up(N, LANE)
            ROWS = n_pad // LANE
            pad_cols = n_pad - N

    # Contiguous row-major reshapes are free; the last batch element is selected
    # purely via DMA addressing in the index_map (no wrapper-side slice copy).
    if pad_cols:
        pad = ((0, 0), (0, pad_cols))
        p_view = jnp.pad(inputs.reshape(B, N), pad).reshape(B, ROWS, LANE)
        t_view = jnp.pad(targets.reshape(B, N), pad).reshape(B, ROWS, LANE)
    else:
        p_view = inputs.reshape(B, ROWS, LANE)
        t_view = targets.reshape(B, ROWS, LANE)

    TILE_R = _choose_row_tile(ROWS, LANE, tile_bytes)
    num_tiles = pl.cdiv(ROWS, TILE_R)
    last = B - 1  # static: only the final loop iteration's BCE is returned

    in_spec = pl.BlockSpec((pl.Squeezed(), TILE_R, LANE), lambda i: (last, i, 0))
    out_spec = pl.BlockSpec((TILE_R, LANE), lambda i: (i, 0))

    core_parallel = getattr(pltpu, "CORE_PARALLEL", None)
    if (want_core_parallel and core_parallel is not None
            and num_tiles >= 2 and num_tiles % 2 == 0):
        dim_sem = (core_parallel,)  # split this mem/EUP-bound loop across both v7x TCs
    else:
        dim_sem = ("parallel",)

    cost = pl.CostEstimate(flops=7 * ROWS * LANE,
                           transcendentals=2 * ROWS * LANE,
                           bytes_accessed=12 * ROWS * LANE)

    out2d = pl.pallas_call(
        _bce_kernel,
        out_shape=jax.ShapeDtypeStruct((ROWS, LANE), jnp.float32),
        grid=(num_tiles,),
        in_specs=[in_spec, in_spec],
        out_specs=out_spec,
        compiler_params=pltpu.CompilerParams(
            dimension_semantics=dim_sem,
            vmem_limit_bytes=vmem_limit,
        ),
        cost_estimate=cost,
    )(p_view, t_view)

    return out2d.reshape(-1)[:N].reshape(C, H, W)


if __name__ == "__main__":
    key = jax.random.PRNGKey(0)
    k1, k2 = jax.random.split(key)

    B, C, H, W = 2, 4, 16, 16
    # BCE inputs must be probabilities in [0, 1]
    x = jax.random.uniform(k1, (B, C, H, W), dtype=jnp.float32, minval=0.01, maxval=0.99)
    y = jax.random.uniform(k2, (B, C, H, W), dtype=jnp.float32, minval=0.0, maxval=1.0)

    out = jax.block_until_ready(pixelwise_bce_loss(x, y))

    # pure-JAX reference (BCE of the last batch element, PyTorch -100 log clamp)
    p_ref = x[B - 1]
    t_ref = y[B - 1]
    ref = -(t_ref * jnp.maximum(jnp.log(p_ref), -100.0)
            + (1.0 - t_ref) * jnp.maximum(jnp.log1p(-p_ref), -100.0))

    assert out.shape == (C, H, W)
    assert jnp.allclose(out, ref, atol=1e-5), "mismatch vs reference"

    print("KERNEL_OK")
</pallas_src>

<mosaic_0001>
module attributes {stable_mosaic.version = 11 : i64} {
  func.func @_bce_kernel(%arg0: i32, %arg1: memref<1x8x128xf32, #tpu.memory_space<vmem>>, %arg2: memref<1x8x128xf32, #tpu.memory_space<vmem>>, %arg3: memref<8x128xf32, #tpu.memory_space<vmem>>) attributes {dimension_semantics = [#tpu.dimension_semantics<parallel>], iteration_bounds = array<i64: 1>, scalar_prefetch = 0 : i64, scratch_operands = 0 : i64, tpu.core_type = #tpu.core_type<tc>, window_params = [{transform_indices = @transform_0, window_bounds = array<i64: 1, 8, 128>}, {transform_indices = @transform_1, window_bounds = array<i64: 1, 8, 128>}, {transform_indices = @transform_2, window_bounds = array<i64: 8, 128>}]} {
    %c0 = arith.constant 0 : index
    %c0_0 = arith.constant 0 : index
    %c0_1 = arith.constant 0 : index
    %0 = vector.load %arg1[%c0, %c0_0, %c0_1] : memref<1x8x128xf32, #tpu.memory_space<vmem>>, vector<1x8x128xf32>
    %1 = vector.shape_cast %0 : vector<1x8x128xf32> to vector<8x128xf32>
    %c0_2 = arith.constant 0 : index
    %c0_3 = arith.constant 0 : index
    %c0_4 = arith.constant 0 : index
    %2 = vector.load %arg2[%c0_2, %c0_3, %c0_4] : memref<1x8x128xf32, #tpu.memory_space<vmem>>, vector<1x8x128xf32>
    %3 = vector.shape_cast %2 : vector<1x8x128xf32> to vector<8x128xf32>
    %4 = math.log %1 : vector<8x128xf32>
    %cst = arith.constant -1.000000e+02 : f32
    %5 = vector.broadcast %cst : f32 to vector<8x128xf32>
    %6 = arith.maximumf %4, %5 : vector<8x128xf32>
    %cst_5 = arith.constant 0.000000e+00 : f32
    %7 = vector.broadcast %cst_5 : f32 to vector<8x128xf32>
    %8 = arith.subf %7, %1 : vector<8x128xf32>
    %9 = math.log1p %8 : vector<8x128xf32>
    %cst_6 = arith.constant -1.000000e+02 : f32
    %10 = vector.broadcast %cst_6 : f32 to vector<8x128xf32>
    %11 = arith.maximumf %9, %10 : vector<8x128xf32>
    %12 = arith.mulf %3, %6 : vector<8x128xf32>
    %cst_7 = arith.constant 1.000000e+00 : f32
    %13 = vector.broadcast %cst_7 : f32 to vector<8x128xf32>
    %14 = arith.subf %13, %3 : vector<8x128xf32>
    %15 = arith.mulf %14, %11 : vector<8x128xf32>
    %16 = arith.addf %12, %15 : vector<8x128xf32>
    %cst_8 = arith.constant 0.000000e+00 : f32
    %17 = vector.broadcast %cst_8 : f32 to vector<8x128xf32>
    %18 = arith.subf %17, %16 : vector<8x128xf32>
    %c0_9 = arith.constant 0 : index
    %c0_10 = arith.constant 0 : index
    %19 = vector.load %arg3[%c0_9, %c0_10] : memref<8x128xf32, #tpu.memory_space<vmem>>, vector<8x128xf32>
    tpu.vector_store %arg3[%c0_9, %c0_10], %18 {strides = array<i32>} : memref<8x128xf32, #tpu.memory_space<vmem>>, vector<8x128xf32>,
    return
  }
  func.func @transform_0(%arg0: i32) -> (i32, i32, i32) {
    %c1_i32 = arith.constant 1 : i32
    %c0_i32 = arith.constant 0 : i32
    %c0_i32_0 = arith.constant 0 : i32
    return %c1_i32, %arg0, %c0_i32 : i32, i32, i32
  }
  func.func @transform_1(%arg0: i32) -> (i32, i32, i32) {
    %c1_i32 = arith.constant 1 : i32
    %c0_i32 = arith.constant 0 : i32
    %c0_i32_0 = arith.constant 0 : i32
    return %c1_i32, %arg0, %c0_i32 : i32, i32, i32
  }
  func.func @transform_2(%arg0: i32) -> (i32, i32) {
    %c0_i32 = arith.constant 0 : i32
    %c0_i32_0 = arith.constant 0 : i32
    return %arg0, %c0_i32 : i32, i32
  }
}

</mosaic_0001>

<llo_original>
// kernel: pixelwise_bce_loss.1
$region0: #{pixelwise_bce_loss.1}
  #allocation0 [shape = 'u32[]', space=smem, size = 0x4, offset = 0x4, fixed_abs, tag = 'smem constant byte address 0x4 - core index']
  #allocation1 [shape = 'u32[144,128]{1,0:T(1,128)}', space=vmem, size = 0x12000, scoped, tag = 'internal scratch']
  %s0 = inlined_call_operand.vmem [shape: f32[2,8,128], index: 0, kind: input, shape index: {}]
  %s1 = inlined_call_operand.vmem [shape: f32[2,8,128], index: 1, kind: input, shape index: {}]
  %s2 = inlined_call_operand.vmem [shape: f32[8,128], index: 2, kind: output, shape index: {}]
  %s3 = sld [smem:[#allocation0]]
  $region18: #{pixelwise_bce_loss.1} parent=0
    _
  %s5 = ssub.s32 1, %s3
  %s6 = scalar_select 0, %s5, %s3
  // Predicated region
  $region2: #{pixelwise_bce_loss.1} parent=0 // pred_check
    _
  $region3: #{pixelwise_bce_loss.1} parent=0 // pred_check_branch
    %8 = sbr.rel (0) target = $region5
  $region4: #{pixelwise_bce_loss.1} parent=0 // pred_region
    %s9 = scalar_lea.vmem %s0, 8
  $region5: #{pixelwise_bce_loss.1} parent=0 // pred_fallthru
    _
  // Predicated region
  $region6: #{pixelwise_bce_loss.1} parent=0 // pred_check
    _
  $region7: #{pixelwise_bce_loss.1} parent=0 // pred_check_branch
    %11 = sbr.rel (0) target = $region9
  $region8: #{pixelwise_bce_loss.1} parent=0 // pred_region
    %s12 = scalar_lea.vmem %s1, 8
  $region9: #{pixelwise_bce_loss.1} parent=0 // pred_fallthru
    _
  %s13 = scalar_lea.vmem %s0, 8
  %s14 = scalar_lea.vmem %s1, 8
  %s15 = scalar_lea.vmem %s0, 8
  %s16 = scalar_lea.vmem %s1, 8
  %v17 = vld [vmem:[%s15] sm:$0xff]
  %v18 = vld [vmem:[%s16] sm:$0xff]
  %v19 = vlog2.pop %v17
  %v20 = vmul.f32 %v19, 0.6931472
  %v21 = vmax.f32 %v20, -100.0
  %v22 = vsub.f32 0.0, %v17
  %v23 = vadd.f32 %v22, 1.0
  %v24 = vlog2.pop %v23
  %v25 = vmul.f32 %v24, 0.6931472
  %v26 = vmul.f32 -0.5, %v22
  %v27 = vadd.f32 %v26, 1.0
  %v28 = vmul.f32 %v27, %v22
  %v29 = vand.u32 2147483647, %v22
  %vm30 = vcmp.lt.f32.partialorder %v29, 0.0004427343
  %v31 = vsel %vm30, %v28, %v25
  %v32 = vmax.f32 %v31, -100.0
  %v33 = vmul.f32 %v18, %v21
  %v34 = vsub.f32 1.0, %v18
  %v35 = vmul.f32 %v34, %v32
  %v36 = vadd.f32 %v33, %v35
  %v37 = vsub.f32 0.0, %v36
  %38 = vst [vmem:[%s2] sm:$0xff] %v37
  // Predicated region
  $region10: #{pixelwise_bce_loss.1} parent=0 // pred_check
    _
  $region11: #{pixelwise_bce_loss.1} parent=0 // pred_check_branch
    %40 = sbr.rel (0) target = $region13
  $region12: #{pixelwise_bce_loss.1} parent=0 // pred_region
    _
  $region13: #{pixelwise_bce_loss.1} parent=0 // pred_fallthru
    _
  // Predicated region
  $region14: #{pixelwise_bce_loss.1} parent=0 // pred_check
    _
  $region15: #{pixelwise_bce_loss.1} parent=0 // pred_check_branch
    %42 = sbr.rel (0) target = $region17
  $region16: #{pixelwise_bce_loss.1} parent=0 // pred_region
    _
  $region17: #{pixelwise_bce_loss.1} parent=0 // pred_fallthru
    _

</llo_original>
